<compile_context>
chip_gen: v5e
topology: v5e:2x2
jax: 0.10.0
libtpu: 0.0.40
codegen_flags: <defaults>
</compile_context>

<pallas_src>
import jax
import jax.numpy as jnp
from jax import lax
from jax.experimental import pallas as pl
from jax.experimental.pallas import tpu as pltpu

# ----------------------------- model hyperparams -----------------------------
POOLING = "last"        # 'last' / 'eos' (same branch in the reference module)
NORMALIZE = False       # matches MMEBModel.__init__ default
TEMPERATURE = 0.02

B = 2                   # batch
S = 8                   # sequence length
H = 128                 # hidden size   (lane-dense: multiple of 128)
V = 128                 # synthetic vocab (lane-dense one-hot contraction)


# ------------------------------ spec helpers ---------------------------------
def _vmem_spec():
    return pl.BlockSpec(memory_space=pltpu.MemorySpace.VMEM)


# ------------------------------ kernel helpers --------------------------------
def _pooled_reps(ids_ref, mask_ref, w_eff_ref, bias_ref, n_groups):
    """Synthetic per-token encode + 'last'/'eos' pooling, all vector ops.

    ids_ref  : (R*S, 1) int32 VMEM   token ids (R = n_groups * batch)
    mask_ref : (R, S)   int32 VMEM   attention mask
    w_eff    : (V, H)   bf16  VMEM   precomputed embed @ W
    bias     : (1, H)   f32   VMEM
    returns  : (R, H) f32 pooled reps.  The left-padding test is evaluated per
               group (the reference pools qry and tgt with separate calls).
    """
    R, S_ = mask_ref.shape
    RS = R * S_
    Vv = w_eff_ref.shape[0]
    rpg = R // n_groups                               # batch rows per group

    # ---- 1) encode all tokens with ONE MXU matmul (one-hot gather fused) ----
    tok_iota = lax.broadcasted_iota(jnp.int32, (RS, Vv), 1)
    one_hot = jnp.where(tok_iota == ids_ref[...], 1.0, 0.0).astype(jnp.bfloat16)
    h = jnp.tanh(
        jnp.dot(one_hot, w_eff_ref[...], preferred_element_type=jnp.float32)
        + bias_ref[...])                              # (RS, H) f32, stays in vregs

    # ---- 2) pooling ('last'/'eos') from the VMEM attention mask -------------
    mask = mask_ref[...]                              # (R, S) int32
    cnt = jnp.sum(mask, axis=1, keepdims=True)        # attention_mask.sum(dim=1)
    last_col = mask[:, S_ - 1:S_]                     # attention_mask[:, -1]
    row_id = lax.broadcasted_iota(jnp.int32, (R, 1), 0)

    # per-group left_padding = (attention_mask[:, -1].sum() == batch_size)
    lp_row = jnp.zeros((R, 1), jnp.int32)
    for g in range(n_groups):                         # unrolled over <= 2 groups
        in_g = (row_id >= g * rpg) & (row_id < (g + 1) * rpg)
        s_g = jnp.sum(jnp.where(in_g, last_col, 0), axis=0, keepdims=True)
        lp_g = (s_g == rpg).astype(jnp.int32)
        lp_row = jnp.where(in_g, lp_g, lp_row)

    eos = cnt - 1
    idx = jnp.where(lp_row == 1, S_ - 1, eos)         # (R, 1)
    idx = jnp.where(idx < 0, idx + S_, idx)           # torch negative-index wrap

    # selection matrix sel[r, r*S + idx[r]] = 1 ; pooled = sel @ h
    # -> exact row selection, single dense (R, H) result, no partial stores.
    col = lax.broadcasted_iota(jnp.int32, (R, RS), 1)
    row = lax.broadcasted_iota(jnp.int32, (R, RS), 0)
    sel = jnp.where(col == row * S_ + idx, 1.0, 0.0)  # (R, RS) f32
    reps = jnp.dot(sel, h, preferred_element_type=jnp.float32)   # (R, H) f32

    if NORMALIZE:
        sq = jnp.sum(reps * reps, axis=-1, keepdims=True)
        reps = reps * lax.rsqrt(jnp.maximum(sq, 1e-12))
    return reps


# ------------------------------ Pallas kernels --------------------------------
def _encode_kernel(ids_ref, mask_ref, w_eff_ref, bias_ref, out_ref):
    out_ref[...] = _pooled_reps(ids_ref, mask_ref, w_eff_ref, bias_ref,
                                n_groups=1)


def _contrastive_kernel(ids_ref, mask_ref, w_eff_ref, bias_ref, loss_ref):
    reps = _pooled_reps(ids_ref, mask_ref, w_eff_ref, bias_ref, n_groups=2)
    bsz = mask_ref.shape[0] // 2
    q = reps[:bsz]                                    # (bsz, H) f32
    t = reps[bsz:]                                    # (bsz, H) f32
    # NOTE: the reference re-normalizes here when normalize=True; L2-normalize
    # is idempotent, so pooling-time normalization is sufficient.

    inv_temp = jnp.float32(1.0 / TEMPERATURE)
    # logits = qry @ tgt.T / temperature — contract the last axes directly (no
    # transpose materialized); 1/temperature folded into one multiply.
    logits = lax.dot_general(q.astype(jnp.bfloat16), t.astype(jnp.bfloat16),
                             (((1,), (1,)), ((), ())),
                             preferred_element_type=jnp.float32) * inv_temp
    # correct-class logit taken from the logits diagonal itself (bit-identical
    # to logits[i, i]).
    eye = (lax.broadcasted_iota(jnp.int32, (bsz, bsz), 0)
           == lax.broadcasted_iota(jnp.int32, (bsz, bsz), 1))
    diag = jnp.sum(jnp.where(eye, logits, 0.0), axis=1, keepdims=True)  # (bsz,1)

    # cross entropy, labels = arange(bsz), reduction='mean' (stable LSE)
    m = jnp.max(logits, axis=1, keepdims=True)
    lse = m + jnp.log(jnp.sum(jnp.exp(logits - m), axis=1, keepdims=True))
    loss_ref[...] = (jnp.sum(lse - diag, axis=0, keepdims=True)
                     * jnp.float32(1.0 / bsz))        # (1, 1)


# ------------------------------ pallas wrappers --------------------------------
def encode_pooled(ids, mask, w_eff, bias):
    bsz, seq = ids.shape
    h = w_eff.shape[1]
    return pl.pallas_call(
        _encode_kernel,
        out_shape=jax.ShapeDtypeStruct((bsz, h), jnp.float32),
        in_specs=[_vmem_spec()] * 4,
        out_specs=_vmem_spec(),
    )(ids.reshape(bsz * seq, 1), mask, w_eff, bias)


def contrastive_forward(q_ids, q_mask, t_ids, t_mask, w_eff, bias):
    bsz, seq = q_ids.shape
    # fuse the query and target encodes into ONE kernel invocation
    ids_all = jnp.concatenate([q_ids, t_ids], axis=0).reshape(2 * bsz * seq, 1)
    mask_all = jnp.concatenate([q_mask, t_mask], axis=0)         # (2*bsz, seq)
    loss = pl.pallas_call(
        _contrastive_kernel,
        out_shape=jax.ShapeDtypeStruct((1, 1), jnp.float32),
        in_specs=[_vmem_spec()] * 4,
        out_specs=_vmem_spec(),
    )(ids_all, mask_all, w_eff, bias)
    return loss[0, 0]


# ------------------------------ MMEBModel (JAX) --------------------------------
class MMEBModelPallas:
    """JAX/Pallas port of MMEBModel.forward (pooling='last', mean CE loss)."""

    def __init__(self, params):
        self.params = params

    def _encode(self, inputs):
        return encode_pooled(inputs["input_ids"], inputs["attention_mask"],
                             self.params["w_eff"], self.params["b"])

    def forward(self, *args, **kwargs):
        if "qry" in kwargs and "tgt" in kwargs:
            q, t = kwargs["qry"], kwargs["tgt"]
            return contrastive_forward(
                q["input_ids"], q["attention_mask"],
                t["input_ids"], t["attention_mask"],
                self.params["w_eff"], self.params["b"])
        if len(args) == 1 and isinstance(args[0], dict):
            return self._encode(args[0])
        if "model_input" in kwargs:
            return self._encode(kwargs["model_input"])
        if len(kwargs) == 1:
            v = next(iter(kwargs.values()))
            if isinstance(v, dict):
                return self._encode(v)
        raise ValueError("Must provide (qry, tgt) or a single input dict")


# ----------------------------------- main ---------------------------------------
if __name__ == "__main__":
    key = jax.random.PRNGKey(0)
    k_emb, k_w, k_b, k_q, k_t = jax.random.split(key, 5)

    embed = jax.random.normal(k_emb, (V, H), jnp.float32) * 0.1
    # weights kept in bf16 (matches the torch_dtype=bfloat16 backbone)
    w = (jax.random.normal(k_w, (H, H), jnp.float32) * 0.1).astype(jnp.bfloat16)
    bias = jax.random.normal(k_b, (1, H), jnp.float32) * 0.01
    # Fold the dense layer into the table once, outside the kernel:
    #   gather(embed)[tok] @ W == (embed @ W)[tok]
    w_eff = jnp.dot(embed, w.astype(jnp.float32)).astype(jnp.bfloat16)

    params = {"w_eff": w_eff, "b": bias}

    # right-padded inputs (matches config.padding_side = 'right' in build())
    qry_ids = jax.random.randint(k_q, (B, S), 0, V, jnp.int32)
    tgt_ids = jax.random.randint(k_t, (B, S), 0, V, jnp.int32)
    qry_mask = jnp.array([[1, 1, 1, 1, 1, 0, 0, 0],
                          [1, 1, 1, 1, 1, 1, 1, 0]], jnp.int32)
    tgt_mask = jnp.array([[1, 1, 1, 0, 0, 0, 0, 0],
                          [1, 1, 1, 1, 1, 1, 1, 1]], jnp.int32)

    model = MMEBModelPallas(params)

    # encoding mode (single fused kernel)
    reps = model.forward(model_input={"input_ids": qry_ids,
                                      "attention_mask": qry_mask})
    reps = jax.block_until_ready(reps)
    assert reps.shape == (B, H)
    assert bool(jnp.all(jnp.isfinite(reps)))

    # contrastive mode (single fused kernel: both encodes + logits + CE loss)
    loss = model.forward(qry={"input_ids": qry_ids, "attention_mask": qry_mask},
                         tgt={"input_ids": tgt_ids, "attention_mask": tgt_mask})
    loss = jax.block_until_ready(loss)
    assert loss.shape == () and bool(jnp.isfinite(loss))

    print("KERNEL_OK")
</pallas_src>

<mosaic_0001>
module attributes {stable_mosaic.version = 11 : i64} {
  func.func @_encode_kernel(%arg0: memref<16x1xi32, #tpu.memory_space<vmem>>, %arg1: memref<2x8xi32, #tpu.memory_space<vmem>>, %arg2: memref<128x128xbf16, #tpu.memory_space<vmem>>, %arg3: memref<1x128xf32, #tpu.memory_space<vmem>>, %arg4: memref<2x128xf32, #tpu.memory_space<vmem>>) attributes {dimension_semantics = [], scalar_prefetch = 0 : i64, scratch_operands = 0 : i64, tpu.core_type = #tpu.core_type<tc>} {
    %0 = tpu.iota {dimensions = array<i32: 1>} : vector<16x128xi32>
    %c0 = arith.constant 0 : index
    %c0_0 = arith.constant 0 : index
    %1 = vector.load %arg0[%c0, %c0_0] : memref<16x1xi32, #tpu.memory_space<vmem>>, vector<16x1xi32>
    %2 = vector.broadcast %1 : vector<16x1xi32> to vector<16x128xi32>
    %3 = arith.cmpi eq, %0, %2 : vector<16x128xi32>
    %cst = arith.constant 1.000000e+00 : f32
    %cst_1 = arith.constant 0.000000e+00 : f32
    %4 = vector.broadcast %cst : f32 to vector<16x128xf32>
    %5 = vector.broadcast %cst_1 : f32 to vector<16x128xf32>
    %6 = arith.select %3, %4, %5 : vector<16x128xi1>, vector<16x128xf32>
    %7 = arith.truncf %6 : vector<16x128xf32> to vector<16x128xbf16>
    %c0_2 = arith.constant 0 : index
    %c0_3 = arith.constant 0 : index
    %8 = vector.load %arg2[%c0_2, %c0_3] : memref<128x128xbf16, #tpu.memory_space<vmem>>, vector<128x128xbf16>
    %cst_4 = arith.constant dense<0.000000e+00> : vector<16x128xf32>
    %9 = tpu.matmul %7, %8, %cst_4 {dimension_numbers = #tpu.dot_dimension_numbers<[1], [0], [0], [1], [0, 0, 1, 1], [], []>} : vector<16x128xbf16>, vector<128x128xbf16>, vector<16x128xf32> -> vector<16x128xf32>
    %c0_5 = arith.constant 0 : index
    %c0_6 = arith.constant 0 : index
    %10 = vector.load %arg3[%c0_5, %c0_6] : memref<1x128xf32, #tpu.memory_space<vmem>>, vector<1x128xf32>
    %11 = vector.broadcast %10 : vector<1x128xf32> to vector<16x128xf32>
    %12 = arith.addf %9, %11 : vector<16x128xf32>
    %13 = math.tanh %12 : vector<16x128xf32>
    %c0_7 = arith.constant 0 : index
    %c0_8 = arith.constant 0 : index
    %14 = vector.load %arg1[%c0_7, %c0_8] : memref<2x8xi32, #tpu.memory_space<vmem>>, vector<2x8xi32>
    %cst_9 = arith.constant dense<0> : vector<2xi32>
    %15 = vector.multi_reduction <add>, %14, %cst_9 [1] : vector<2x8xi32> to vector<2xi32>
    %16 = vector.shape_cast %15 : vector<2xi32> to vector<2x1xi32>
    %17 = vector.extract_strided_slice %14 {offsets = [0, 7], sizes = [2, 1], strides = [1, 1]} : vector<2x8xi32> to vector<2x1xi32>
    %18 = tpu.iota {dimensions = array<i32: 0>} : vector<2x1xi32>
    %c0_i32 = arith.constant 0 : i32
    %19 = vector.broadcast %c0_i32 : i32 to vector<2x1xi32>
    %c0_i32_10 = arith.constant 0 : i32
    %20 = vector.broadcast %c0_i32_10 : i32 to vector<2x1xi32>
    %21 = arith.cmpi sge, %18, %20 : vector<2x1xi32>
    %c2_i32 = arith.constant 2 : i32
    %22 = vector.broadcast %c2_i32 : i32 to vector<2x1xi32>
    %23 = arith.cmpi slt, %18, %22 : vector<2x1xi32>
    %24 = arith.andi %21, %23 : vector<2x1xi1>
    %c0_i32_11 = arith.constant 0 : i32
    %25 = vector.broadcast %c0_i32_11 : i32 to vector<2x1xi32>
    %26 = arith.select %24, %17, %25 : vector<2x1xi1>, vector<2x1xi32>
    %cst_12 = arith.constant dense<0> : vector<1xi32>
    %27 = vector.multi_reduction <add>, %26, %cst_12 [0] : vector<2x1xi32> to vector<1xi32>
    %28 = vector.shape_cast %27 : vector<1xi32> to vector<1x1xi32>
    %c2_i32_13 = arith.constant 2 : i32
    %29 = vector.broadcast %c2_i32_13 : i32 to vector<1x1xi32>
    %30 = arith.cmpi eq, %28, %29 : vector<1x1xi32>
    %31 = arith.extui %30 : vector<1x1xi1> to vector<1x1xi32>
    %32 = vector.shape_cast %31 : vector<1x1xi32> to vector<1x1xi32>
    %33 = vector.broadcast %32 : vector<1x1xi32> to vector<2x1xi32>
    %34 = arith.select %24, %33, %19 : vector<2x1xi1>, vector<2x1xi32>
    %c1_i32 = arith.constant 1 : i32
    %35 = vector.broadcast %c1_i32 : i32 to vector<2x1xi32>
    %36 = arith.subi %16, %35 : vector<2x1xi32>
    %c1_i32_14 = arith.constant 1 : i32
    %37 = vector.broadcast %c1_i32_14 : i32 to vector<2x1xi32>
    %38 = arith.cmpi eq, %34, %37 : vector<2x1xi32>
    %c7_i32 = arith.constant 7 : i32
    %39 = vector.broadcast %c7_i32 : i32 to vector<2x1xi32>
    %40 = arith.select %38, %39, %36 : vector<2x1xi1>, vector<2x1xi32>
    %c0_i32_15 = arith.constant 0 : i32
    %41 = vector.broadcast %c0_i32_15 : i32 to vector<2x1xi32>
    %42 = arith.cmpi slt, %40, %41 : vector<2x1xi32>
    %c8_i32 = arith.constant 8 : i32
    %43 = vector.broadcast %c8_i32 : i32 to vector<2x1xi32>
    %44 = arith.addi %40, %43 : vector<2x1xi32>
    %45 = arith.select %42, %44, %40 : vector<2x1xi1>, vector<2x1xi32>
    %46 = tpu.iota {dimensions = array<i32: 1>} : vector<2x16xi32>
    %47 = tpu.iota {dimensions = array<i32: 0>} : vector<2x16xi32>
    %c8_i32_16 = arith.constant 8 : i32
    %48 = vector.broadcast %c8_i32_16 : i32 to vector<2x16xi32>
    %49 = arith.muli %47, %48 : vector<2x16xi32>
    %50 = vector.broadcast %45 : vector<2x1xi32> to vector<2x16xi32>
    %51 = arith.addi %49, %50 : vector<2x16xi32>
    %52 = arith.cmpi eq, %46, %51 : vector<2x16xi32>
    %cst_17 = arith.constant 1.000000e+00 : f32
    %cst_18 = arith.constant 0.000000e+00 : f32
    %53 = vector.broadcast %cst_17 : f32 to vector<2x16xf32>
    %54 = vector.broadcast %cst_18 : f32 to vector<2x16xf32>
    %55 = arith.select %52, %53, %54 : vector<2x16xi1>, vector<2x16xf32>
    %cst_19 = arith.constant dense<0.000000e+00> : vector<2x128xf32>
    %56 = tpu.matmul %55, %13, %cst_19 {dimension_numbers = #tpu.dot_dimension_numbers<[1], [0], [0], [1], [0, 0, 1, 1], [], []>} : vector<2x16xf32>, vector<16x128xf32>, vector<2x128xf32> -> vector<2x128xf32>
    %c0_20 = arith.constant 0 : index
    %c0_21 = arith.constant 0 : index
    %57 = vector.load %arg4[%c0_20, %c0_21] : memref<2x128xf32, #tpu.memory_space<vmem>>, vector<2x128xf32>
    tpu.vector_store %arg4[%c0_20, %c0_21], %56 {strides = array<i32>} : memref<2x128xf32, #tpu.memory_space<vmem>>, vector<2x128xf32>,
    return
  }
}

</mosaic_0001>

<llo_original>
// kernel: tpu_custom_call.1
$region0: #{tpu_custom_call.1}
  #allocation0 [shape = 'u32[]', space=smem, size = 0x4, offset = 0x4, fixed_abs, tag = 'smem constant byte address 0x4 - core index']
  #allocation1 [shape = 'u32[72,128]{1,0:T(1,128)}', space=vmem, size = 0x9000, scoped, tag = 'internal scratch']
  %s0 = inlined_call_operand.vmem [shape: s32[16,1], index: 0, kind: input, shape index: {}]
  %s1 = inlined_call_operand.vmem [shape: s32[2,8], index: 1, kind: input, shape index: {}]
  %s2 = inlined_call_operand.hbm [shape: bf16[128,128], index: 2, kind: input, shape index: {}]
  %s3 = inlined_call_operand.vmem [shape: f32[1,128], index: 3, kind: input, shape index: {}]
  %s4 = inlined_call_operand.hbm [shape: f32[2,128], index: 4, kind: output, shape index: {}]
  %s5 = sld [smem:[#allocation0]]
  $region30: #{tpu_custom_call.1} parent=0
    _
  %s7 = ssub.s32 1, %s5
  %s8 = scalar_select 0, %s7, %s5
  $region1: #{tpu_custom_call.1} parent=0
    #allocation2 [shape = 'u8[32768]{0}', space=vmem, size = 0x8000, scoped, tag = 'input window, operand 2, single buffered']
    #allocation3 [shape = 's32[1]{0}', space=sflag, size = 0x4, scoped, tag = 'scoped memory for tpu_custom_call.1']
    #allocation4 [shape = 's32[1]{0}', space=sflag, size = 0x4, scoped, tag = 'scoped memory for tpu_custom_call.1']
    #allocation5 [shape = 'u8[1024]{0}', space=vmem, size = 0x400, scoped, tag = 'output window, operand 0, single buffered']
    %9 = vsyncpa [#allocation3], 0
    %10 = vsyncpa [#allocation4], 0
    // Predicated region
    $region2: #{tpu_custom_call.1} parent=1 // pred_check
      _
    $region3: #{tpu_custom_call.1} parent=1 // pred_check_branch
      %12 = sbr.rel (0) target = $region5
    $region4: #{tpu_custom_call.1} parent=1 // pred_region
      _
    $region5: #{tpu_custom_call.1} parent=1 // pred_fallthru
      _
    // Predicated region
    $region6: #{tpu_custom_call.1} parent=1 // pred_check
      _
    $region7: #{tpu_custom_call.1} parent=1 // pred_check_branch
      %14 = sbr.rel (0) target = $region9
    $region8: #{tpu_custom_call.1} parent=1 // pred_region
      _
    $region9: #{tpu_custom_call.1} parent=1 // pred_fallthru
      _
    // Predicated region
    $region10: #{tpu_custom_call.1} parent=1 // pred_check
      _
    $region11: #{tpu_custom_call.1} parent=1 // pred_check_branch
      %16 = sbr.rel (0) target = $region13
    $region12: #{tpu_custom_call.1} parent=1 // pred_region
      %18 = vsyncadd [#allocation3], 0
      %s19 = sshll.u32 %s2, 4
      %s20 = int_to_ptr.hbm [resolvable:$true] %s19
      %s21 = sshll.u32 [#allocation2], 4
      %s22 = int_to_ptr.vmem [resolvable:$true] %s21
      %27 = dma.hbm_to_vmem [thread:$0]  %s20, 1024, %s22, [#allocation3], 64, 64, 4
    $region13: #{tpu_custom_call.1} parent=1 // pred_fallthru
      _
    // Predicated region
    $region14: #{tpu_custom_call.1} parent=1 // pred_check
      _
    $region15: #{tpu_custom_call.1} parent=1 // pred_check_branch
      %29 = sbr.rel (0) target = $region17
    $region16: #{tpu_custom_call.1} parent=1 // pred_region
      _
    $region17: #{tpu_custom_call.1} parent=1 // pred_fallthru
      _
    // Predicated region
    $region18: #{tpu_custom_call.1} parent=1 // pred_check
      _
    $region19: #{tpu_custom_call.1} parent=1 // pred_check_branch
      %31 = sbr.rel (0) target = $region21
    $region20: #{tpu_custom_call.1} parent=1 // pred_region
      %33 = dma.done [#allocation3], 1024
    $region21: #{tpu_custom_call.1} parent=1 // pred_fallthru
      _
    %v34 = vlaneseq
    %v35 = vand.u32 %v34, 127
    %v36 = vld [vmem:[%s0] sm:$0xff]
    %v37 = vld [vmem:[%s0 + $0x8] sm:$0xff]
    %38 = vset.pattern.permute.xlu0 0
    %39 = vperm.xlu0 %38, %v36
    %v40 = vpop.permute.xlu0 %39
    %41 = vset.pattern.permute.xlu0 0
    %42 = vperm.xlu0 %41, %v37
    %v43 = vpop.permute.xlu0 %42
    %vm44 = vcmp.eq.s32.totalorder %v35, %v40
    %vm45 = vcmp.eq.s32.totalorder %v35, %v43
    %v46 = vsel %vm44, 1.0, 0.0
    %v47 = vsel %vm45, 1.0, 0.0
    %v48 = vpack.c.bf16 %v47, %v46
    %v49 = vld [vmem:[#allocation2] sm:$0xf]
    %v50 = vld [vmem:[#allocation2 + $0x4] sm:$0xf]
    %v51 = vld [vmem:[#allocation2 + $0x8] sm:$0xf]
    %v52 = vld [vmem:[#allocation2 + $0xc] sm:$0xf]
    %v53 = vld [vmem:[#allocation2 + $0x10] sm:$0xf]
    %v54 = vld [vmem:[#allocation2 + $0x14] sm:$0xf]
    %v55 = vld [vmem:[#allocation2 + $0x18] sm:$0xf]
    %v56 = vld [vmem:[#allocation2 + $0x1c] sm:$0xf]
    %v57 = vld [vmem:[#allocation2 + $0x20] sm:$0xf]
    %v58 = vld [vmem:[#allocation2 + $0x24] sm:$0xf]
    %v59 = vld [vmem:[#allocation2 + $0x28] sm:$0xf]
    %v60 = vld [vmem:[#allocation2 + $0x2c] sm:$0xf]
    %v61 = vld [vmem:[#allocation2 + $0x30] sm:$0xf]
    %v62 = vld [vmem:[#allocation2 + $0x34] sm:$0xf]
    %v63 = vld [vmem:[#allocation2 + $0x38] sm:$0xf]
    %v64 = vld [vmem:[#allocation2 + $0x3c] sm:$0xf]
    %v65 = vld [vmem:[%s3] sm:$0x1]
    %v67 = vperm.slane %v65, 0
    %v85 = vunpack.c.l.b16 %v49
    %v86 = vunpack.c.l.b16 %v50
    %v87 = vunpack.c.l.b16 %v51
    %v88 = vunpack.c.l.b16 %v52
    %v89 = vunpack.c.l.b16 %v53
    %v90 = vunpack.c.l.b16 %v54
    %v91 = vunpack.c.l.b16 %v55
    %v92 = vunpack.c.l.b16 %v56
    %v93 = vunpack.c.l.b16 %v57
    %v94 = vunpack.c.l.b16 %v58
    %v95 = vunpack.c.l.b16 %v59
    %v96 = vunpack.c.l.b16 %v60
    %v97 = vunpack.c.l.b16 %v61
    %v98 = vunpack.c.l.b16 %v62
    %v99 = vunpack.c.l.b16 %v63
    %v100 = vunpack.c.l.b16 %v64
    %v101 = vpack.c.b16 %v86, %v85
    %v102 = vpack.c.b16 %v88, %v87
    %v103 = vpack.c.b16 %v90, %v89
    %v104 = vpack.c.b16 %v92, %v91
    %v105 = vpack.c.b16 %v94, %v93
    %v106 = vpack.c.b16 %v96, %v95
    %v107 = vpack.c.b16 %v98, %v97
    %v108 = vpack.c.b16 %v100, %v99
    %117 = vmatpush.bf16.msra.mxu0 %v108
    %118 = vmatpush.bf16.msra.mxu0 %v107
    %119 = vmatpush.bf16.msra.mxu0 %v106
    %120 = vmatpush.bf16.msra.mxu0 %v105
    %121 = vmatpush.bf16.msra.mxu0 %v104
    %122 = vmatpush.bf16.msra.mxu0 %v103
    %123 = vmatpush.bf16.msra.mxu0 %v102
    %124 = vmatpush.bf16.msra.mxu0 %v101
    %125 = vmatmul.bf16.gmra.mxu0 %v48
    %v126 = vpop.f32.mrf.mxu0
    %v127 = vadd.f32 %v67, %v126
    %v128 = vpop.f32.mrf.mxu0
    %v129 = vadd.f32 %v67, %v128
    %130 = vdwg.mxu0
    %v131 = vtanh.pop %v127
    %v132 = vtanh.pop %v129
    %v133 = vld [vmem:[%s1] sm:$0x3]
    %vm134 = vcmask 58368
    %v135 = vsel %vm134, %v133, 0
    %v136 = vand.u32 %v135, 65535
    %v137 = vshrl.u32 %v135, 16
    %v138 = vcvt.s32.f32 %v136
    %v139 = vcvt.s32.f32 %v137
    %140 = vadd.xlane.f32.xlu0 %v138
    %v141 = vpop.xlane.xlu0 %140
    %142 = vadd.xlane.f32.xlu0 %v139
    %v143 = vpop.xlane.xlu0 %142
    %v144 = vcvt.f32.s32 %v141
    %v145 = vcvt.f32.s32 %v143
    %v146 = vshll.u32 %v145, 16
    %v147 = vadd.s32 %v146, %v144
    %v148 = vlaneseq
    %v149 = vshrl.u32 %v148, 7
    %vm150 = vcmp.ge.s32.totalorder %v149, 0
    %vm151 = vcmp.lt.s32.totalorder %v149, 2
    %vm152 = vmand %vm150, %vm151
    %v153 = vsel %vm152, %v133, 0
    %vm154 = vcmask 58424
    %v155 = vsel %vm154, %v153, 0
    %v156 = vrot.slane %v155, 4
    %v157 = vadd.s32 %v155, %v156
    %v158 = vrot.slane %v157, 2
    %v159 = vadd.s32 %v157, %v158
    %v160 = vrot.slane %v159, 1
    %v161 = vadd.s32 %v159, %v160
    %vm162 = vcmp.eq.s32.totalorder %v161, 2
    %v163 = vsel %vm162, 1, 0
    %v164 = vsel %vm152, %v163, 0
    %v165 = vsub.s32 %v147, 1
    %vm166 = vcmp.eq.s32.totalorder %v164, 1
    %v167 = vsel %vm166, 7, %v165
    %vm168 = vcmp.lt.s32.totalorder %v167, 0
    %v169 = vadd.s32 %v167, 8
    %v170 = vsel %vm168, %v169, %v167
    %v171 = vmul.u32 %v149, 8
    %172 = vset.pattern.permute.xlu0 7
    %173 = vperm.xlu0 %172, %v170
    %v174 = vpop.permute.xlu0 %173
    %v175 = vadd.s32 %v171, %v174
    %vm176 = vcmp.eq.s32.totalorder %v35, %v175
    %v177 = vsel %vm176, 1.0, 0.0
    %vm178 = vcmask 130048
    %v180 = vsel %vm178, %v177, 0
    %182 = vmatpush.msra.mxu0 0.0
    %183 = vmatpush.msra.mxu0 0.0
    %184 = vmatpush.msra.mxu0 0.0
    %185 = vmatpush.msra.mxu0 0.0
    %186 = vmatpush.msra.mxu0 0.0
    %187 = vmatpush.msra.mxu0 0.0
    %188 = vmatpush.msra.mxu0 0.0
    %189 = vmatpush.msra.mxu0 0.0
    %190 = vmatpush.msra.mxu0 0.0
    %191 = vmatpush.msra.mxu0 0.0
    %192 = vmatpush.msra.mxu0 0.0
    %193 = vmatpush.msra.mxu0 0.0
    %194 = vmatpush.msra.mxu0 0.0
    %195 = vmatpush.msra.mxu0 0.0
    %196 = vmatpush.msra.mxu0 %v132
    %197 = vmatpush.msra.mxu0 %v131
    %198 = vmatmul.f32.gmra.mxu0 %v180
    %v199 = vpop.f32.mrf.mxu0
    %v200 = vadd.f32 0.0, %v199
    %201 = vdwg.mxu0
    %202 = vst [vmem:[#allocation5] sm:$0x3] %v200
    // Predicated region
    $region22: #{tpu_custom_call.1} parent=1 // pred_check
      _
    $region23: #{tpu_custom_call.1} parent=1 // pred_check_branch
      %204 = sbr.rel (0) target = $region25
    $region24: #{tpu_custom_call.1} parent=1 // pred_region
      %206 = vsyncadd [#allocation4], 0
      %s208 = sshll.u32 [#allocation5], 4
      %s209 = int_to_ptr.vmem [resolvable:$true] %s208
      %s210 = sshll.u32 %s4, 4
      %s211 = int_to_ptr.hbm [resolvable:$true] %s210
      %213 = dma.vmem_to_hbm [thread:$0]  %s209, 32, %s211, [#allocation4]
    $region25: #{tpu_custom_call.1} parent=1 // pred_fallthru
      _
    // Predicated region
    $region26: #{tpu_custom_call.1} parent=1 // pred_check
      _
    $region27: #{tpu_custom_call.1} parent=1 // pred_check_branch
      %215 = sbr.rel (0) target = $region29
    $region28: #{tpu_custom_call.1} parent=1 // pred_region
      %217 = dma.done [#allocation4], 32
    $region29: #{tpu_custom_call.1} parent=1 // pred_fallthru
      _
    %218 = vsyncpa [#allocation3], 1
    %219 = vsyncpa [#allocation4], 1

</llo_original>
